<compile_context>
chip_gen: v7x
topology: tpu7x:2x2x1
jax: 0.10.0
libtpu: 0.0.40
codegen_flags: <defaults>
</compile_context>

<pallas_src>
import jax
import jax.numpy as jnp
from jax.experimental import pallas as pl
from jax.experimental.pallas import tpu as pltpu


def _round_up(x, m):
    return (x + m - 1) // m * m


def w2v_loss_kernel(in_ref, ctx_ref, sel_ref, loss_ref):
    """One batch tile.

    in_ref   : [bt, D]     center-word embeddings
    ctx_ref  : [bt, C*D]   lane-dense concatenated [pos | neg] context embeddings
    sel_ref  : [C*D, C]    constant +/-1 block selector (resident across steps)
    loss_ref : [1, 1, bt]  per-row negative-sampling loss (lane-dense)
    """
    in_emb = in_ref[...]                                   # [bt, D]
    ctx = ctx_ref[...]                                     # [bt, C*D]
    d = in_ref.shape[1]
    c_total = ctx_ref.shape[1] // d

    # Center embedding replicated across the C context slots: one hoisted lane
    # concatenation, no lane-padded [bt, C, D] tensor is ever materialised.
    in_rep = jnp.concatenate([in_emb] * c_total, axis=1)   # [bt, C*D]

    # Per-(row, slot) dot product over D and the +/- sign are folded into one
    # constant selector matmul -> MXU, instead of VPU mult + XLU reduce + a
    # per-step iota/where sign sweep.
    z = jnp.dot(ctx * in_rep, sel_ref[...],
                preferred_element_type=jnp.float32)        # [bt, C]

    # numerically stable log(sigmoid(z)) = min(z, 0) - log1p(exp(-|z|))
    ls = jnp.minimum(z, 0.0) - jnp.log1p(jnp.exp(-jnp.abs(z)))
    loss = -jnp.sum(ls, axis=-1)                           # [bt]
    loss_ref[...] = loss[None, None, :]                    # lane-dense store


def word2vec_nsg_loss(in_embed_w, out_embed_w, input_labels, pos_labels,
                      neg_labels, *, b_tile=1024, vmem_limit_bytes=None):
    """Replicates EmbeddingModel.forward.

    in_embed_w, out_embed_w : [V, D] float32 embedding tables
    input_labels            : [B]    int32
    pos_labels              : [B, P] int32
    neg_labels              : [B, N] int32
    returns loss            : [B]    float32
    """
    B = input_labels.shape[0]
    P = pos_labels.shape[1]
    N = neg_labels.shape[1]
    C = P + N
    D = in_embed_w.shape[1]

    # Batch tile: multiple of 8 (sublane granularity); pad B to whole tiles.
    bt = _round_up(min(b_tile, max(B, 8)), 8)
    if B >= 256 and _round_up(B, bt) == bt:
        # A single tile would collapse the grid to one step; split it so the
        # "parallel" axis can be sharded across v7x's two TensorCores (no-op
        # on single-core v5e/v6e).
        bt = _round_up((B + 1) // 2, 8)
    b_pad = _round_up(B, bt)

    if b_pad != B:
        pad = b_pad - B
        input_labels = jnp.pad(input_labels, (0, pad))
        pos_labels = jnp.pad(pos_labels, ((0, pad), (0, 0)))
        neg_labels = jnp.pad(neg_labels, ((0, pad), (0, 0)))

    # Gathers stay in XLA (glue).
    # TODO(synk): fuse the out_embed gather against a VMEM-resident table once
    #   general 2-D jnp.take lowers inside Mosaic kernels (see header note).
    ctx_labels = jnp.concatenate([pos_labels, neg_labels], axis=1)    # [Bp, C]
    input_embedding = jnp.take(in_embed_w, input_labels, axis=0)      # [Bp, D]
    ctx_embedding = jnp.take(out_embed_w, ctx_labels, axis=0)         # [Bp, C, D]

    # Lane-dense ctx layout: one contiguous [bt, C*D] DMA per grid step.
    ctx_flat = ctx_embedding.reshape(b_pad, C * D).astype(jnp.float32)
    input_embedding = input_embedding.astype(jnp.float32)

    # Constant block selector: sel[c*D + d, c'] = +1 (positive slot) or -1
    # (negative sample) when c == c', else 0.
    slot = jnp.arange(C * D, dtype=jnp.int32) // D                    # [C*D]
    col = jnp.arange(C, dtype=jnp.int32)                              # [C]
    sign = jnp.where(col < P, 1.0, -1.0).astype(jnp.float32)
    sel = jnp.where(slot[:, None] == col[None, :], sign[None, :], 0.0)

    num_tiles = b_pad // bt
    grid = (num_tiles,)

    if vmem_limit_bytes is None:
        lane = 128
        ctx_bytes = bt * _round_up(C * D, lane) * 4
        in_bytes = bt * _round_up(D, lane) * 4
        sel_bytes = C * D * _round_up(C, lane) * 4
        # double-buffered inputs + resident selector + in-kernel temporaries
        est = 2 * (ctx_bytes + in_bytes) + sel_bytes + 2 * ctx_bytes
        vmem_limit_bytes = int(min(48 * 1024 * 1024,     # v7x: 64 MiB physical
                                   max(32 * 1024 * 1024, 2 * est)))

    cost = pl.CostEstimate(
        flops=2 * b_pad * C * D * (C + 1),        # selector matmul + product
        transcendentals=2 * b_pad * C,            # exp + log1p per score
        bytes_accessed=4 * (b_pad * (C + 1) * D + C * D * C + b_pad),
    )

    loss = pl.pallas_call(
        w2v_loss_kernel,
        out_shape=jax.ShapeDtypeStruct((num_tiles, 1, bt), jnp.float32),
        grid_spec=pltpu.PrefetchScalarGridSpec(
            num_scalar_prefetch=0,
            grid=grid,
            in_specs=[
                pl.BlockSpec((bt, D), lambda i: (i, 0)),
                pl.BlockSpec((bt, C * D), lambda i: (i, 0)),
                pl.BlockSpec((C * D, C), lambda i: (0, 0)),  # resident constant
            ],
            out_specs=pl.BlockSpec((1, 1, bt), lambda i: (i, 0, 0)),
        ),
        compiler_params=pltpu.CompilerParams(
            dimension_semantics=("parallel",),
            vmem_limit_bytes=vmem_limit_bytes,
        ),
        cost_estimate=cost,
    )(input_embedding, ctx_flat, sel)

    return loss.reshape(-1)[:B]   # [B], matches torch's squeeze()


def reference_loss(in_embed_w, out_embed_w, input_labels, pos_labels, neg_labels):
    input_embedding = jnp.take(in_embed_w, input_labels, axis=0)
    pos_embedding = jnp.take(out_embed_w, pos_labels, axis=0)
    neg_embedding = jnp.take(out_embed_w, neg_labels, axis=0)
    log_pos = jnp.einsum("bpd,bd->bp", pos_embedding, input_embedding)
    log_neg = jnp.einsum("bnd,bd->bn", neg_embedding, -input_embedding)
    lp = jnp.sum(jax.nn.log_sigmoid(log_pos), axis=1)
    ln = jnp.sum(jax.nn.log_sigmoid(log_neg), axis=1)
    return -(lp + ln)


if __name__ == "__main__":
    # Small, module-consistent shapes.
    vocab_size = 64
    embed_size = 32
    batch = 20
    c = 4          # context window radius -> P = 2*c
    K = 2          # negatives per positive -> N = 2*c*K
    P = 2 * c
    N = 2 * c * K

    key = jax.random.PRNGKey(0)
    k_in, k_out, k_il, k_pos, k_neg = jax.random.split(key, 5)

    initrange = 0.5 / embed_size
    in_embed_w = jax.random.uniform(
        k_in, (vocab_size, embed_size), jnp.float32, -initrange, initrange)
    out_embed_w = jax.random.uniform(
        k_out, (vocab_size, embed_size), jnp.float32, -initrange, initrange)

    input_labels = jax.random.randint(k_il, (batch,), 0, vocab_size, jnp.int32)
    pos_labels = jax.random.randint(k_pos, (batch, P), 0, vocab_size, jnp.int32)
    neg_labels = jax.random.randint(k_neg, (batch, N), 0, vocab_size, jnp.int32)

    # b_tile=8 keeps the demo tiny while exercising a multi-step batch grid:
    # batch=20 -> padded to 24 -> grid=(3,). Production default is b_tile=1024.
    loss = word2vec_nsg_loss(
        in_embed_w, out_embed_w, input_labels, pos_labels, neg_labels,
        b_tile=8)
    loss = jax.block_until_ready(loss)

    ref = reference_loss(
        in_embed_w, out_embed_w, input_labels, pos_labels, neg_labels)
    assert loss.shape == (batch,)
    assert jnp.allclose(loss, ref, atol=1e-5, rtol=1e-5), (loss, ref)

    print("KERNEL_OK")
</pallas_src>

<mosaic_0001>
module attributes {stable_mosaic.version = 11 : i64} {
  func.func @w2v_loss_kernel(%arg0: i32, %arg1: memref<8x32xf32, #tpu.memory_space<vmem>>, %arg2: memref<8x768xf32, #tpu.memory_space<vmem>>, %arg3: memref<768x24xf32, #tpu.memory_space<vmem>>, %arg4: memref<1x1x8xf32, #tpu.memory_space<vmem>>) attributes {dimension_semantics = [#tpu.dimension_semantics<parallel>], iteration_bounds = array<i64: 3>, scalar_prefetch = 0 : i64, scratch_operands = 0 : i64, tpu.core_type = #tpu.core_type<tc>, window_params = [{transform_indices = @transform_0, window_bounds = array<i64: 8, 32>}, {transform_indices = @transform_1, window_bounds = array<i64: 8, 768>}, {pipeline_mode = #tpu.pipeline_mode<synchronous>, transform_indices = @transform_2, window_bounds = array<i64: 768, 24>}, {transform_indices = @transform_3, window_bounds = array<i64: 1, 1, 8>}]} {
    %c0 = arith.constant 0 : index
    %c0_0 = arith.constant 0 : index
    %0 = vector.load %arg1[%c0, %c0_0] : memref<8x32xf32, #tpu.memory_space<vmem>>, vector<8x32xf32>
    %c0_1 = arith.constant 0 : index
    %c0_2 = arith.constant 0 : index
    %1 = vector.load %arg2[%c0_1, %c0_2] : memref<8x768xf32, #tpu.memory_space<vmem>>, vector<8x768xf32>
    %2 = tpu.concatenate %0, %0, %0, %0, %0, %0, %0, %0, %0, %0, %0, %0, %0, %0, %0, %0 in 1 : vector<8x32xf32>, vector<8x32xf32>, vector<8x32xf32>, vector<8x32xf32>, vector<8x32xf32>, vector<8x32xf32>, vector<8x32xf32>, vector<8x32xf32>, vector<8x32xf32>, vector<8x32xf32>, vector<8x32xf32>, vector<8x32xf32>, vector<8x32xf32>, vector<8x32xf32>, vector<8x32xf32>, vector<8x32xf32> -> vector<8x512xf32>
    %3 = tpu.concatenate %0, %0, %0, %0, %0, %0, %0, %0 in 1 : vector<8x32xf32>, vector<8x32xf32>, vector<8x32xf32>, vector<8x32xf32>, vector<8x32xf32>, vector<8x32xf32>, vector<8x32xf32>, vector<8x32xf32> -> vector<8x256xf32>
    %4 = tpu.concatenate %2, %3 in 1 : vector<8x512xf32>, vector<8x256xf32> -> vector<8x768xf32>
    %5 = arith.mulf %1, %4 : vector<8x768xf32>
    %c0_3 = arith.constant 0 : index
    %c0_4 = arith.constant 0 : index
    %6 = vector.load %arg3[%c0_3, %c0_4] : memref<768x24xf32, #tpu.memory_space<vmem>>, vector<768x24xf32>
    %cst = arith.constant dense<0.000000e+00> : vector<8x24xf32>
    %7 = tpu.matmul %5, %6, %cst {dimension_numbers = #tpu.dot_dimension_numbers<[1], [0], [0], [1], [0, 0, 1, 1], [], []>} : vector<8x768xf32>, vector<768x24xf32>, vector<8x24xf32> -> vector<8x24xf32>
    %cst_5 = arith.constant 0.000000e+00 : f32
    %8 = vector.broadcast %cst_5 : f32 to vector<8x24xf32>
    %9 = arith.minimumf %7, %8 : vector<8x24xf32>
    %10 = math.absf %7 : vector<8x24xf32>
    %cst_6 = arith.constant 0.000000e+00 : f32
    %11 = vector.broadcast %cst_6 : f32 to vector<8x24xf32>
    %12 = arith.subf %11, %10 : vector<8x24xf32>
    %13 = math.exp %12 : vector<8x24xf32>
    %14 = math.log1p %13 : vector<8x24xf32>
    %15 = arith.subf %9, %14 : vector<8x24xf32>
    %cst_7 = arith.constant dense<0.000000e+00> : vector<8xf32>
    %16 = vector.multi_reduction <add>, %15, %cst_7 [1] : vector<8x24xf32> to vector<8xf32>
    %cst_8 = arith.constant 0.000000e+00 : f32
    %17 = vector.broadcast %cst_8 : f32 to vector<8xf32>
    %18 = arith.subf %17, %16 : vector<8xf32>
    %19 = vector.shape_cast %18 : vector<8xf32> to vector<1x1x8xf32>
    %c0_9 = arith.constant 0 : index
    %c0_10 = arith.constant 0 : index
    %c0_11 = arith.constant 0 : index
    %20 = vector.load %arg4[%c0_9, %c0_10, %c0_11] : memref<1x1x8xf32, #tpu.memory_space<vmem>>, vector<1x1x8xf32>
    tpu.vector_store %arg4[%c0_9, %c0_10, %c0_11], %19 {strides = array<i32>} : memref<1x1x8xf32, #tpu.memory_space<vmem>>, vector<1x1x8xf32>,
    return
  }
  func.func @transform_0(%arg0: i32) -> (i32, i32) {
    %c0_i32 = arith.constant 0 : i32
    %c0_i32_0 = arith.constant 0 : i32
    return %arg0, %c0_i32 : i32, i32
  }
  func.func @transform_1(%arg0: i32) -> (i32, i32) {
    %c0_i32 = arith.constant 0 : i32
    %c0_i32_0 = arith.constant 0 : i32
    return %arg0, %c0_i32 : i32, i32
  }
  func.func @transform_2(%arg0: i32) -> (i32, i32) {
    %c0_i32 = arith.constant 0 : i32
    %c0_i32_0 = arith.constant 0 : i32
    %c0_i32_1 = arith.constant 0 : i32
    return %c0_i32, %c0_i32_0 : i32, i32
  }
  func.func @transform_3(%arg0: i32) -> (i32, i32, i32) {
    %c0_i32 = arith.constant 0 : i32
    %c0_i32_0 = arith.constant 0 : i32
    %c0_i32_1 = arith.constant 0 : i32
    return %arg0, %c0_i32, %c0_i32_0 : i32, i32, i32
  }
}

</mosaic_0001>

<llo_original>
// kernel: tpu_custom_call.1
$region0: #{tpu_custom_call.1}
  #allocation0 [shape = 'u32[]', space=smem, size = 0x4, offset = 0x4, fixed_abs, tag = 'smem constant byte address 0x4 - core index']
  #allocation1 [shape = 'u32[144,128]{1,0:T(1,128)}', space=vmem, size = 0x12000, scoped, tag = 'internal scratch']
  %s0 = inlined_call_operand.vmem [shape: f32[24,32], index: 0, kind: input, shape index: {}]
  %s1 = inlined_call_operand.vmem [shape: f32[24,768], index: 1, kind: input, shape index: {}]
  %s2 = inlined_call_operand.vmem [shape: f32[768,24], index: 2, kind: input, shape index: {}]
  %s3 = inlined_call_operand.hbm [shape: f32[3,1,8], index: 3, kind: output, shape index: {}]
  %s4 = sld [smem:[#allocation0]]
  $region45: #{tpu_custom_call.1} parent=0
    _
  %s6 = ssub.s32 1, %s4
  %s7 = scalar_select 0, %s6, %s4
  $region1: #{tpu_custom_call.1} parent=0
    #allocation2 [shape = 'u8[1024]{0}', space=vmem, size = 0x400, scoped, tag = 'output window, operand 0']
    #allocation3 [shape = 's32[2]{0}', space=sflag, size = 0x8, scoped, tag = 'scoped memory for tpu_custom_call.1']
    %8 = vsyncpa [#allocation3], 0
    %s9 = scalar_lea.sflag [#allocation3], 1
    %10 = vsyncpa %s9, 0
    loop: start=0, step=1, limit=5
    $region2: #{tpu_custom_call.1} parent=1 // loop_pre_header
      _
    $region3: #{tpu_custom_call.1} parent=1 // loop_header
      %s12 = sphi 0, %s16
      %p13 = scmp.ge.s32.totalorder %s12, 5
      %s22 = sphi 0, %s24
      %s25 = sphi 0, %s22
      %s26 = sphi 0, %s25
      %s42 = sphi 0, %s26
      %s48 = sphi 0, %s50
      %s51 = sphi 0, %s48
      %s52 = sphi 0, %s51
      %s68 = sphi 0, %s52
      %s72 = sphi 0, %s72
      %s74 = sphi 0, %s72
      %s75 = sphi 0, %s74
      %s89 = sphi 0, %s75
      %s95 = sphi 0, %s97
      %s98 = sphi 0, %s95
      %s99 = sphi 0, %s98
      %s115 = sphi 0, %s99
    $region4: #{tpu_custom_call.1} parent=1 // loop_header_branch
      %15 = sbr.rel (%p13) target = $region8
    $region5: #{tpu_custom_call.1} parent=1 // loop_body
      %s17 = ssub.s32 %s12, 1
      %s18 = ssub.s32 %s12, 2
      %s19 = sadd.s32 %s12, 1
      %s20 = ssub.s32 %s12, %s19
      %p21 = scmp.eq.s32.totalorder %s20, 0
      %s23 = sadd.s32 %s22, 1
      %s24 = scalar_select %p21, %s22, %s23
      %p27 = pneg %p21
      %p28 = scmp.eq.s32.totalorder %s12, 2
      %p29 = por %p27, %p28
      %p30 = scmp.ne.s32.totalorder %s22, %s25
      %p31 = scmp.eq.s32.totalorder %s12, 0
      %p32 = por %p30, %p31
      %p33 = scmp.ne.s32.totalorder %s22, %s25
      %p34 = scmp.eq.s32.totalorder %s17, 2
      %p35 = por %p33, %p34
      %p36 = scmp.ne.s32.totalorder %s25, %s26
      %p37 = scmp.eq.s32.totalorder %s17, 0
      %p38 = por %p36, %p37
      %p39 = scmp.ne.s32.totalorder %s25, %s26
      %p40 = scmp.eq.s32.totalorder %s18, 2
      %p41 = por %p39, %p40
      %p43 = scmp.ne.s32.totalorder %s26, %s42
      %p44 = scmp.eq.s32.totalorder %s18, 0
      %p45 = por %p43, %p44
      %s46 = ssub.s32 %s12, %s19
      %p47 = scmp.eq.s32.totalorder %s46, 0
      %s49 = sadd.s32 %s48, 1
      %s50 = scalar_select %p47, %s48, %s49
      %p53 = pneg %p47
      %p54 = scmp.eq.s32.totalorder %s12, 2
      %p55 = por %p53, %p54
      %p56 = scmp.ne.s32.totalorder %s48, %s51
      %p57 = scmp.eq.s32.totalorder %s12, 0
      %p58 = por %p56, %p57
      %p59 = scmp.ne.s32.totalorder %s48, %s51
      %p60 = scmp.eq.s32.totalorder %s17, 2
      %p61 = por %p59, %p60
      %p62 = scmp.ne.s32.totalorder %s51, %s52
      %p63 = scmp.eq.s32.totalorder %s17, 0
      %p64 = por %p62, %p63
      %p65 = scmp.ne.s32.totalorder %s51, %s52
      %p66 = scmp.eq.s32.totalorder %s18, 2
      %p67 = por %p65, %p66
      %p69 = scmp.ne.s32.totalorder %s52, %s68
      %p70 = scmp.eq.s32.totalorder %s18, 0
      %p71 = por %p69, %p70
      %s73 = sadd.s32 %s72, 1
      %p76 = scmp.eq.s32.totalorder %s12, 2
      %p77 = scmp.ne.s32.totalorder %s72, %s74
      %p78 = scmp.eq.s32.totalorder %s12, 0
      %p79 = por %p77, %p78
      %p80 = scmp.ne.s32.totalorder %s72, %s74
      %p81 = scmp.eq.s32.totalorder %s17, 2
      %p82 = por %p80, %p81
      %p83 = scmp.ne.s32.totalorder %s74, %s75
      %p84 = scmp.eq.s32.totalorder %s17, 0
      %p85 = por %p83, %p84
      %p86 = scmp.ne.s32.totalorder %s74, %s75
      %p87 = scmp.eq.s32.totalorder %s18, 2
      %p88 = por %p86, %p87
      %p90 = scmp.ne.s32.totalorder %s75, %s89
      %p91 = scmp.eq.s32.totalorder %s18, 0
      %p92 = por %p90, %p91
      %s93 = ssub.s32 %s12, %s19
      %p94 = scmp.eq.s32.totalorder %s93, 0
      %s96 = sadd.s32 %s95, 1
      %s97 = scalar_select %p94, %s95, %s96
      %p100 = pneg %p94
      %p101 = scmp.eq.s32.totalorder %s12, 2
      %p102 = por %p100, %p101
      %p103 = scmp.ne.s32.totalorder %s95, %s98
      %p104 = scmp.eq.s32.totalorder %s12, 0
      %p105 = por %p103, %p104
      %p106 = scmp.ne.s32.totalorder %s95, %s98
      %p107 = scmp.eq.s32.totalorder %s17, 2
      %p108 = por %p106, %p107
      %p109 = scmp.ne.s32.totalorder %s98, %s99
      %p110 = scmp.eq.s32.totalorder %s17, 0
      %p111 = por %p109, %p110
      %p112 = scmp.ne.s32.totalorder %s98, %s99
      %p113 = scmp.eq.s32.totalorder %s18, 2
      %p114 = por %p112, %p113
      %p116 = scmp.ne.s32.totalorder %s99, %s115
      %p117 = scmp.eq.s32.totalorder %s18, 0
      %p118 = por %p116, %p117
      %p119 = scmp.le.s32.totalorder 1, %s12
      %p120 = scmp.lt.s32.totalorder %s12, 4
      %p121 = pnand %p119, %p120
      %p122 = pneg %p121
      // Predicated region
      $region9: #{tpu_custom_call.1} parent=5 // pred_check
        _
      $region10: #{tpu_custom_call.1} parent=5 // pred_check_branch
        %124 = sbr.rel (%p121) target = $region12
      $region11: #{tpu_custom_call.1} parent=5 // pred_region
        %s125 = ssub.s32 %s12, 1
        // Predicated region
        $region13: #{tpu_custom_call.1} parent=11 // pred_check
          %p126 = pneg %p85
        $region14: #{tpu_custom_call.1} parent=11 // pred_check_branch
          %128 = sbr.rel (%p126) target = $region16
        $region15: #{tpu_custom_call.1} parent=11 // pred_region
          _
        $region16: #{tpu_custom_call.1} parent=11 // pred_fallthru
          _
      $region12: #{tpu_custom_call.1} parent=5 // pred_fallthru
        _
      %p129 = scmp.lt.s32.totalorder %s12, 3
      // Predicated region
      $region17: #{tpu_custom_call.1} parent=5 // pred_check
        %p130 = pneg %p129
      $region18: #{tpu_custom_call.1} parent=5 // pred_check_branch
        %132 = sbr.rel (%p130) target = $region20
      $region19: #{tpu_custom_call.1} parent=5 // pred_region
        // Predicated region
        $region21: #{tpu_custom_call.1} parent=19 // pred_check
          %p133 = pneg %p32
        $region22: #{tpu_custom_call.1} parent=19 // pred_check_branch
          %135 = sbr.rel (%p133) target = $region24
        $region23: #{tpu_custom_call.1} parent=19 // pred_region
          %p136 = scmp.lt.s32.totalorder %s12, 2
          %s137 = scalar_select %p136, %s12, 2
          %s138 = smul.addr %s137, 8
          %s139 = scalar_lea.vmem %s0, %s138
        $region24: #{tpu_custom_call.1} parent=19 // pred_fallthru
          _
        // Predicated region
        $region25: #{tpu_custom_call.1} parent=19 // pred_check
          %p140 = pneg %p58
        $region26: #{tpu_custom_call.1} parent=19 // pred_check_branch
          %142 = sbr.rel (%p140) target = $region28
        $region27: #{tpu_custom_call.1} parent=19 // pred_region
          %p143 = scmp.lt.s32.totalorder %s12, 2
          %s144 = scalar_select %p143, %s12, 2
          %s145 = smul.addr %s144, 6
          %s146 = smul.addr %s145, 8
          %s147 = scalar_lea.vmem %s1, %s146
        $region28: #{tpu_custom_call.1} parent=19 // pred_fallthru
          _
      $region20: #{tpu_custom_call.1} parent=5 // pred_fallthru
        _
      %p148 = scmp.le.s32.totalorder 1, %s12
      %p149 = scmp.lt.s32.totalorder %s12, 4
      %p150 = pnand %p148, %p149
      %p151 = pneg %p150
      // Predicated region
      $region29: #{tpu_custom_call.1} parent=5 // pred_check
        _
      $region30: #{tpu_custom_call.1} parent=5 // pred_check_branch
        %153 = sbr.rel (%p150) target = $region32
      $region31: #{tpu_custom_call.1} parent=5 // pred_region
        %s154 = ssub.s32 %s12, 1
        %p155 = scmp.lt.s32.totalorder %s17, 2
        %s156 = scalar_select %p155, %s17, 2
        %s157 = smul.addr %s156, 8
        %s158 = scalar_lea.vmem %s0, %s157
        %p159 = pneg %p38
        %p160 = pneg %p35
        %p161 = scmp.lt.s32.totalorder %s17, 2
        %s162 = scalar_select %p161, %s17, 2
        %s163 = smul.addr %s162, 6
        %s164 = smul.addr %s163, 8
        %s165 = scalar_lea.vmem %s1, %s164
        %p166 = pneg %p64
        %p167 = pneg %p61
        %p168 = pneg %p85
        %p169 = pneg %p82
        %p170 = pneg %p111
        %p171 = pneg %p108
        %s172 = sand.u32 %s98, 1
        %s173 = scalar_lea.sflag [#allocation3], %s172
        %s174 = sand.u32 %s98, 1
        %s175 = scalar_lea.vmem [#allocation2], %s174
        %p176 = scmp.lt.s32.totalorder %s17, 2
        %s177 = scalar_select %p176, %s17, 2
        %s178 = smul.addr %s177, 8
        %s179 = scalar_lea.vmem %s0, %s178
        %p180 = scmp.lt.s32.totalorder %s17, 2
        %s181 = scalar_select %p180, %s17, 2
        %s182 = smul.addr %s181, 6
        %s183 = smul.addr %s182, 8
        %s184 = scalar_lea.vmem %s1, %s183
        %v185 = vld [vmem:[%s179] sm:$0xff]
        %v186 = vld [vmem:[%s184] sm:$0xff]
        %v187 = vld [vmem:[%s184 + $0x8] sm:$0xff]
        %v188 = vld [vmem:[%s184 + $0x10] sm:$0xff]
        %v189 = vld [vmem:[%s184 + $0x18] sm:$0xff]
        %v190 = vld [vmem:[%s184 + $0x20] sm:$0xff]
        %v191 = vld [vmem:[%s184 + $0x28] sm:$0xff]
        %193 = vrot.lane.b32.xlu0 %v185, 32
        %v194 = vpop.permute.xlu0 %193
        %196 = vrot.lane.b32.xlu0 %v185, 64
        %v197 = vpop.permute.xlu0 %196
        %199 = vrot.lane.b32.xlu0 %v185, 96
        %v200 = vpop.permute.xlu0 %199
        %vm202 = vcmask 261120
        %v203 = vsel %vm202, %v185, %v194
        %vm204 = vcmask 523264
        %v205 = vsel %vm204, %v203, %v197
        %vm206 = vcmask 785408
        %v207 = vsel %vm206, %v205, %v200
        %v208 = vmul.f32 %v186, %v207
        %v209 = vmul.f32 %v187, %v207
        %v210 = vmul.f32 %v188, %v207
        %v211 = vmul.f32 %v189, %v207
        %v212 = vmul.f32 %v190, %v207
        %v213 = vmul.f32 %v191, %v207
        %v214 = vld [vmem:[%s2] sm:$0xff]
        %v215 = vld [vmem:[%s2 + $0x8] sm:$0xff]
        %v216 = vld [vmem:[%s2 + $0x10] sm:$0xff]
        %v217 = vld [vmem:[%s2 + $0x18] sm:$0xff]
        %v218 = vld [vmem:[%s2 + $0x20] sm:$0xff]
        %v219 = vld [vmem:[%s2 + $0x28] sm:$0xff]
        %v220 = vld [vmem:[%s2 + $0x30] sm:$0xff]
        %v221 = vld [vmem:[%s2 + $0x38] sm:$0xff]
        %v222 = vld [vmem:[%s2 + $0x40] sm:$0xff]
        %v223 = vld [vmem:[%s2 + $0x48] sm:$0xff]
        %v224 = vld [vmem:[%s2 + $0x50] sm:$0xff]
        %v225 = vld [vmem:[%s2 + $0x58] sm:$0xff]
        %v226 = vld [vmem:[%s2 + $0x60] sm:$0xff]
        %v227 = vld [vmem:[%s2 + $0x68] sm:$0xff]
        %v228 = vld [vmem:[%s2 + $0x70] sm:$0xff]
        %v229 = vld [vmem:[%s2 + $0x78] sm:$0xff]
        %v230 = vld [vmem:[%s2 + $0x80] sm:$0xff]
        %v231 = vld [vmem:[%s2 + $0x88] sm:$0xff]
        %v232 = vld [vmem:[%s2 + $0x90] sm:$0xff]
        %v233 = vld [vmem:[%s2 + $0x98] sm:$0xff]
        %v234 = vld [vmem:[%s2 + $0xa0] sm:$0xff]
        %v235 = vld [vmem:[%s2 + $0xa8] sm:$0xff]
        %v236 = vld [vmem:[%s2 + $0xb0] sm:$0xff]
        %v237 = vld [vmem:[%s2 + $0xb8] sm:$0xff]
        %v238 = vld [vmem:[%s2 + $0xc0] sm:$0xff]
        %v239 = vld [vmem:[%s2 + $0xc8] sm:$0xff]
        %v240 = vld [vmem:[%s2 + $0xd0] sm:$0xff]
        %v241 = vld [vmem:[%s2 + $0xd8] sm:$0xff]
        %v242 = vld [vmem:[%s2 + $0xe0] sm:$0xff]
        %v243 = vld [vmem:[%s2 + $0xe8] sm:$0xff]
        %v244 = vld [vmem:[%s2 + $0xf0] sm:$0xff]
        %v245 = vld [vmem:[%s2 + $0xf8] sm:$0xff]
        %v246 = vld [vmem:[%s2 + $0x100] sm:$0xff]
        %v247 = vld [vmem:[%s2 + $0x108] sm:$0xff]
        %v248 = vld [vmem:[%s2 + $0x110] sm:$0xff]
        %v249 = vld [vmem:[%s2 + $0x118] sm:$0xff]
        %v250 = vld [vmem:[%s2 + $0x120] sm:$0xff]
        %v251 = vld [vmem:[%s2 + $0x128] sm:$0xff]
        %v252 = vld [vmem:[%s2 + $0x130] sm:$0xff]
        %v253 = vld [vmem:[%s2 + $0x138] sm:$0xff]
        %v254 = vld [vmem:[%s2 + $0x140] sm:$0xff]
        %v255 = vld [vmem:[%s2 + $0x148] sm:$0xff]
        %v256 = vld [vmem:[%s2 + $0x150] sm:$0xff]
        %v257 = vld [vmem:[%s2 + $0x158] sm:$0xff]
        %v258 = vld [vmem:[%s2 + $0x160] sm:$0xff]
        %v259 = vld [vmem:[%s2 + $0x168] sm:$0xff]
        %v260 = vld [vmem:[%s2 + $0x170] sm:$0xff]
        %v261 = vld [vmem:[%s2 + $0x178] sm:$0xff]
        %v262 = vld [vmem:[%s2 + $0x180] sm:$0xff]
        %v263 = vld [vmem:[%s2 + $0x188] sm:$0xff]
        %v264 = vld [vmem:[%s2 + $0x190] sm:$0xff]
        %v265 = vld [vmem:[%s2 + $0x198] sm:$0xff]
        %v266 = vld [vmem:[%s2 + $0x1a0] sm:$0xff]
        %v267 = vld [vmem:[%s2 + $0x1a8] sm:$0xff]
        %v268 = vld [vmem:[%s2 + $0x1b0] sm:$0xff]
        %v269 = vld [vmem:[%s2 + $0x1b8] sm:$0xff]
        %v270 = vld [vmem:[%s2 + $0x1c0] sm:$0xff]
        %v271 = vld [vmem:[%s2 + $0x1c8] sm:$0xff]
        %v272 = vld [vmem:[%s2 + $0x1d0] sm:$0xff]
        %v273 = vld [vmem:[%s2 + $0x1d8] sm:$0xff]
        %v274 = vld [vmem:[%s2 + $0x1e0] sm:$0xff]
        %v275 = vld [vmem:[%s2 + $0x1e8] sm:$0xff]
        %v276 = vld [vmem:[%s2 + $0x1f0] sm:$0xff]
        %v277 = vld [vmem:[%s2 + $0x1f8] sm:$0xff]
        %v278 = vld [vmem:[%s2 + $0x200] sm:$0xff]
        %v279 = vld [vmem:[%s2 + $0x208] sm:$0xff]
        %v280 = vld [vmem:[%s2 + $0x210] sm:$0xff]
        %v281 = vld [vmem:[%s2 + $0x218] sm:$0xff]
        %v282 = vld [vmem:[%s2 + $0x220] sm:$0xff]
        %v283 = vld [vmem:[%s2 + $0x228] sm:$0xff]
        %v284 = vld [vmem:[%s2 + $0x230] sm:$0xff]
        %v285 = vld [vmem:[%s2 + $0x238] sm:$0xff]
        %v286 = vld [vmem:[%s2 + $0x240] sm:$0xff]
        %v287 = vld [vmem:[%s2 + $0x248] sm:$0xff]
        %v288 = vld [vmem:[%s2 + $0x250] sm:$0xff]
        %v289 = vld [vmem:[%s2 + $0x258] sm:$0xff]
        %v290 = vld [vmem:[%s2 + $0x260] sm:$0xff]
        %v291 = vld [vmem:[%s2 + $0x268] sm:$0xff]
        %v292 = vld [vmem:[%s2 + $0x270] sm:$0xff]
        %v293 = vld [vmem:[%s2 + $0x278] sm:$0xff]
        %v294 = vld [vmem:[%s2 + $0x280] sm:$0xff]
        %v295 = vld [vmem:[%s2 + $0x288] sm:$0xff]
        %v296 = vld [vmem:[%s2 + $0x290] sm:$0xff]
        %v297 = vld [vmem:[%s2 + $0x298] sm:$0xff]
        %v298 = vld [vmem:[%s2 + $0x2a0] sm:$0xff]
        %v299 = vld [vmem:[%s2 + $0x2a8] sm:$0xff]
        %v300 = vld [vmem:[%s2 + $0x2b0] sm:$0xff]
        %v301 = vld [vmem:[%s2 + $0x2b8] sm:$0xff]
        %v302 = vld [vmem:[%s2 + $0x2c0] sm:$0xff]
        %v303 = vld [vmem:[%s2 + $0x2c8] sm:$0xff]
        %v304 = vld [vmem:[%s2 + $0x2d0] sm:$0xff]
        %v305 = vld [vmem:[%s2 + $0x2d8] sm:$0xff]
        %v306 = vld [vmem:[%s2 + $0x2e0] sm:$0xff]
        %v307 = vld [vmem:[%s2 + $0x2e8] sm:$0xff]
        %v308 = vld [vmem:[%s2 + $0x2f0] sm:$0xff]
        %v309 = vld [vmem:[%s2 + $0x2f8] sm:$0xff]
        %310 = vmatprep.subr.mxu0 0.0
        %311 = vmatpush1.msra.mxu0 %v214
        %312 = vmatprep.subr.mxu0 0.0
        %313 = vmatpush1.msra.mxu0 %v215
        %314 = vmatprep.subr.mxu0 0.0
        %315 = vmatpush1.msra.mxu0 %v216
        %316 = vmatprep.subr.mxu0 0.0
        %317 = vmatpush1.msra.mxu0 %v217
        %318 = vmatprep.subr.mxu0 0.0
        %319 = vmatpush1.msra.mxu0 %v218
        %320 = vmatprep.subr.mxu0 0.0
        %321 = vmatpush1.msra.mxu0 %v219
        %322 = vmatprep.subr.mxu0 0.0
        %323 = vmatpush1.msra.mxu0 %v220
        %324 = vmatprep.subr.mxu0 0.0
        %325 = vmatpush1.msra.mxu0 %v221
        %326 = vmatprep.subr.mxu0 0.0
        %327 = vmatpush1.msra.mxu0 %v222
        %328 = vmatprep.subr.mxu0 0.0
        %329 = vmatpush1.msra.mxu0 %v223
        %330 = vmatprep.subr.mxu0 0.0
        %331 = vmatpush1.msra.mxu0 %v224
        %332 = vmatprep.subr.mxu0 0.0
        %333 = vmatpush1.msra.mxu0 %v225
        %334 = vmatprep.subr.mxu0 0.0
        %335 = vmatpush1.msra.mxu0 %v226
        %336 = vmatprep.subr.mxu0 0.0
        %337 = vmatpush1.msra.mxu0 %v227
        %338 = vmatprep.subr.mxu0 0.0
        %339 = vmatpush1.msra.mxu0 %v228
        %340 = vmatprep.subr.mxu0 0.0
        %341 = vmatpush1.msra.mxu0 %v229
        %342 = vmatprep.subr.mxu0 0.0
        %343 = vmatpush1.msra.mxu0 %v230
        %344 = vmatprep.subr.mxu0 0.0
        %345 = vmatpush1.msra.mxu0 %v231
        %346 = vmatprep.subr.mxu0 0.0
        %347 = vmatpush1.msra.mxu0 %v232
        %348 = vmatprep.subr.mxu0 0.0
        %349 = vmatpush1.msra.mxu0 %v233
        %350 = vmatprep.subr.mxu0 0.0
        %351 = vmatpush1.msra.mxu0 %v234
        %352 = vmatprep.subr.mxu0 0.0
        %353 = vmatpush1.msra.mxu0 %v235
        %354 = vmatprep.subr.mxu0 0.0
        %355 = vmatpush1.msra.mxu0 %v236
        %356 = vmatprep.subr.mxu0 0.0
        %357 = vmatpush1.msra.mxu0 %v237
        %358 = vmatprep.subr.mxu0 0.0
        %359 = vmatpush1.msra.mxu0 %v238
        %360 = vmatprep.subr.mxu0 0.0
        %361 = vmatpush1.msra.mxu0 %v239
        %362 = vmatprep.subr.mxu0 0.0
        %363 = vmatpush1.msra.mxu0 %v240
        %364 = vmatprep.subr.mxu0 0.0
        %365 = vmatpush1.msra.mxu0 %v241
        %366 = vmatprep.subr.mxu0 0.0
        %367 = vmatpush1.msra.mxu0 %v242
        %368 = vmatprep.subr.mxu0 0.0
        %369 = vmatpush1.msra.mxu0 %v243
        %370 = vmatprep.subr.mxu0 0.0
        %371 = vmatpush1.msra.mxu0 %v244
        %372 = vmatprep.subr.mxu0 0.0
        %373 = vmatpush1.msra.mxu0 %v245
        %374 = vmatprep.mubr.f32.mxu0 %v209
        %375 = vmatmul.mubr.f32.gmra.mrb[0].mxu0 %v208
        %v376 = vpop.f32.mrb[0].mxu0
        %v377 = vadd.f32 0.0, %v376
        %v378 = vpop.f32.mrb[0].mxu0
        %379 = vdwg.mxu0
        %380 = vmatprep.subr.mxu0 0.0
        %381 = vmatpush1.msra.mxu0 %v246
        %382 = vmatprep.subr.mxu0 0.0
        %383 = vmatpush1.msra.mxu0 %v247
        %384 = vmatprep.subr.mxu0 0.0
        %385 = vmatpush1.msra.mxu0 %v248
        %386 = vmatprep.subr.mxu0 0.0
        %387 = vmatpush1.msra.mxu0 %v249
        %388 = vmatprep.subr.mxu0 0.0
        %389 = vmatpush1.msra.mxu0 %v250
        %390 = vmatprep.subr.mxu0 0.0
        %391 = vmatpush1.msra.mxu0 %v251
        %392 = vmatprep.subr.mxu0 0.0
        %393 = vmatpush1.msra.mxu0 %v252
        %394 = vmatprep.subr.mxu0 0.0
        %395 = vmatpush1.msra.mxu0 %v253
        %396 = vmatprep.subr.mxu0 0.0
        %397 = vmatpush1.msra.mxu0 %v254
        %398 = vmatprep.subr.mxu0 0.0
        %399 = vmatpush1.msra.mxu0 %v255
        %400 = vmatprep.subr.mxu0 0.0
        %401 = vmatpush1.msra.mxu0 %v256
        %402 = vmatprep.subr.mxu0 0.0
        %403 = vmatpush1.msra.mxu0 %v257
        %404 = vmatprep.subr.mxu0 0.0
        %405 = vmatpush1.msra.mxu0 %v258
        %406 = vmatprep.subr.mxu0 0.0
        %407 = vmatpush1.msra.mxu0 %v259
        %408 = vmatprep.subr.mxu0 0.0
        %409 = vmatpush1.msra.mxu0 %v260
        %410 = vmatprep.subr.mxu0 0.0
        %411 = vmatpush1.msra.mxu0 %v261
        %412 = vmatprep.subr.mxu0 0.0
        %413 = vmatpush1.msra.mxu0 %v262
        %414 = vmatprep.subr.mxu0 0.0
        %415 = vmatpush1.msra.mxu0 %v263
        %416 = vmatprep.subr.mxu0 0.0
        %417 = vmatpush1.msra.mxu0 %v264
        %418 = vmatprep.subr.mxu0 0.0
        %419 = vmatpush1.msra.mxu0 %v265
        %420 = vmatprep.subr.mxu0 0.0
        %421 = vmatpush1.msra.mxu0 %v266
        %422 = vmatprep.subr.mxu0 0.0
        %423 = vmatpush1.msra.mxu0 %v267
        %424 = vmatprep.subr.mxu0 0.0
        %425 = vmatpush1.msra.mxu0 %v268
        %426 = vmatprep.subr.mxu0 0.0
        %427 = vmatpush1.msra.mxu0 %v269
        %428 = vmatprep.subr.mxu0 0.0
        %429 = vmatpush1.msra.mxu0 %v270
        %430 = vmatprep.subr.mxu0 0.0
        %431 = vmatpush1.msra.mxu0 %v271
        %432 = vmatprep.subr.mxu0 0.0
        %433 = vmatpush1.msra.mxu0 %v272
        %434 = vmatprep.subr.mxu0 0.0
        %435 = vmatpush1.msra.mxu0 %v273
        %436 = vmatprep.subr.mxu0 0.0
        %437 = vmatpush1.msra.mxu0 %v274
        %438 = vmatprep.subr.mxu0 0.0
        %439 = vmatpush1.msra.mxu0 %v275
        %440 = vmatprep.subr.mxu0 0.0
        %441 = vmatpush1.msra.mxu0 %v276
        %442 = vmatprep.subr.mxu0 0.0
        %443 = vmatpush1.msra.mxu0 %v277
        %444 = vmatprep.mubr.f32.mxu0 %v211
        %445 = vmatmul.mubr.f32.gmra.mrb[0].mxu0 %v210
        %v446 = vpop.f32.mrb[0].mxu0
        %v447 = vadd.f32 %v377, %v446
        %v448 = vpop.f32.mrb[0].mxu0
        %449 = vdwg.mxu0
        %450 = vmatprep.subr.mxu0 0.0
        %451 = vmatpush1.msra.mxu0 %v278
        %452 = vmatprep.subr.mxu0 0.0
        %453 = vmatpush1.msra.mxu0 %v279
        %454 = vmatprep.subr.mxu0 0.0
        %455 = vmatpush1.msra.mxu0 %v280
        %456 = vmatprep.subr.mxu0 0.0
        %457 = vmatpush1.msra.mxu0 %v281
        %458 = vmatprep.subr.mxu0 0.0
        %459 = vmatpush1.msra.mxu0 %v282
        %460 = vmatprep.subr.mxu0 0.0
        %461 = vmatpush1.msra.mxu0 %v283
        %462 = vmatprep.subr.mxu0 0.0
        %463 = vmatpush1.msra.mxu0 %v284
        %464 = vmatprep.subr.mxu0 0.0
        %465 = vmatpush1.msra.mxu0 %v285
        %466 = vmatprep.subr.mxu0 0.0
        %467 = vmatpush1.msra.mxu0 %v286
        %468 = vmatprep.subr.mxu0 0.0
        %469 = vmatpush1.msra.mxu0 %v287
        %470 = vmatprep.subr.mxu0 0.0
        %471 = vmatpush1.msra.mxu0 %v288
        %472 = vmatprep.subr.mxu0 0.0
        %473 = vmatpush1.msra.mxu0 %v289
        %474 = vmatprep.subr.mxu0 0.0
        %475 = vmatpush1.msra.mxu0 %v290
        %476 = vmatprep.subr.mxu0 0.0
        %477 = vmatpush1.msra.mxu0 %v291
        %478 = vmatprep.subr.mxu0 0.0
        %479 = vmatpush1.msra.mxu0 %v292
        %480 = vmatprep.subr.mxu0 0.0
        %481 = vmatpush1.msra.mxu0 %v293
        %482 = vmatprep.subr.mxu0 0.0
        %483 = vmatpush1.msra.mxu0 %v294
        %484 = vmatprep.subr.mxu0 0.0
        %485 = vmatpush1.msra.mxu0 %v295
        %486 = vmatprep.subr.mxu0 0.0
        %487 = vmatpush1.msra.mxu0 %v296
        %488 = vmatprep.subr.mxu0 0.0
        %489 = vmatpush1.msra.mxu0 %v297
        %490 = vmatprep.subr.mxu0 0.0
        %491 = vmatpush1.msra.mxu0 %v298
        %492 = vmatprep.subr.mxu0 0.0
        %493 = vmatpush1.msra.mxu0 %v299
        %494 = vmatprep.subr.mxu0 0.0
        %495 = vmatpush1.msra.mxu0 %v300
        %496 = vmatprep.subr.mxu0 0.0
        %497 = vmatpush1.msra.mxu0 %v301
        %498 = vmatprep.subr.mxu0 0.0
        %499 = vmatpush1.msra.mxu0 %v302
        %500 = vmatprep.subr.mxu0 0.0
        %501 = vmatpush1.msra.mxu0 %v303
        %502 = vmatprep.subr.mxu0 0.0
        %503 = vmatpush1.msra.mxu0 %v304
        %504 = vmatprep.subr.mxu0 0.0
        %505 = vmatpush1.msra.mxu0 %v305
        %506 = vmatprep.subr.mxu0 0.0
        %507 = vmatpush1.msra.mxu0 %v306
        %508 = vmatprep.subr.mxu0 0.0
        %509 = vmatpush1.msra.mxu0 %v307
        %510 = vmatprep.subr.mxu0 0.0
        %511 = vmatpush1.msra.mxu0 %v308
        %512 = vmatprep.subr.mxu0 0.0
        %513 = vmatpush1.msra.mxu0 %v309
        %514 = vmatprep.mubr.f32.mxu0 %v213
        %515 = vmatmul.mubr.f32.gmra.mrb[0].mxu0 %v212
        %v516 = vpop.f32.mrb[0].mxu0
        %v517 = vadd.f32 %v447, %v516
        %v518 = vpop.f32.mrb[0].mxu0
        %519 = vdwg.mxu0
        %v520 = vmin.f32 %v517, 0.0
        %v521 = vand.u32 2147483647, %v517
        %v522 = vsub.f32 0.0, %v521
        %v523 = vmul.f32 %v522, 1.442695
        %v524 = vpow.pop %v523
        %v525 = vadd.f32 %v524, 1.0
        %v526 = vlog2.pop %v525
        %v527 = vmul.f32 %v526, 0.6931472
        %v528 = vmul.f32 -0.5, %v524
        %v529 = vadd.f32 %v528, 1.0
        %v530 = vmul.f32 %v529, %v524
        %v531 = vand.u32 2147483647, %v524
        %vm532 = vcmp.lt.f32.partialorder %v531, 0.0004427343
        %v533 = vsel %vm532, %v530, %v527
        %v534 = vsub.f32 %v520, %v533
        %vm535 = vcmask 195584
        %v536 = vsel %vm535, %v534, 0.0
        %537 = vadd.xlane.f32.xlu0 %v536
        %v538 = vpop.xlane.xlu0 %537
        %v539 = vsub.f32 0.0, %v538
        %v541 = vlaneseq
        %v542 = vand.u32 %v541, 127
        %v543 = vlaneseq
        %v544 = vshrl.u32 %v543, 7
        %v545 = vsub.s32 %v542, %v544
        %v546 = vrot.slane %v539, %v545
        %vm548 = vcmask 57344
        %549 = vst.msk [vmem:[%s175] sm:$0x1] %vm548, %v546
        %s550 = sand.u32 %s98, 1
        %s551 = scalar_lea.sflag [#allocation3], %s550
        %s552 = sand.u32 %s98, 1
        %s553 = scalar_lea.vmem [#allocation2], %s552
        // Predicated region
        $region33: #{tpu_custom_call.1} parent=31 // pred_check
          %p554 = pneg %p108
        $region34: #{tpu_custom_call.1} parent=31 // pred_check_branch
          %556 = sbr.rel (%p554) target = $region36
        $region35: #{tpu_custom_call.1} parent=31 // pred_region
          %s558 = ssub.s32 16, 16
          %559 = vsyncadd %s551, %s558
          %s560 = smul.addr %s17, 16
          %s561 = scalar_lea.hbm %s3, %s560
          %s563 = sshll.u32 %s553, 4
          %s564 = int_to_ptr.vmem [resolvable:$true] %s563
          %566 = dma.vmem_to_hbm [thread:$0]  %s564, 16, %s561, %s551
        $region36: #{tpu_custom_call.1} parent=31 // pred_fallthru
          _
      $region32: #{tpu_custom_call.1} parent=5 // pred_fallthru
        _
      %p567 = scmp.le.s32.totalorder 2, %s12
      // Predicated region
      $region37: #{tpu_custom_call.1} parent=5 // pred_check
        %p568 = pneg %p567
      $region38: #{tpu_custom_call.1} parent=5 // pred_check_branch
        %570 = sbr.rel (%p568) target = $region40
      $region39: #{tpu_custom_call.1} parent=5 // pred_region
        %s571 = ssub.s32 %s12, 2
        // Predicated region
        $region41: #{tpu_custom_call.1} parent=39 // pred_check
          %p572 = pneg %p114
        $region42: #{tpu_custom_call.1} parent=39 // pred_check_branch
          %574 = sbr.rel (%p572) target = $region44
        $region43: #{tpu_custom_call.1} parent=39 // pred_region
          %s575 = sand.u32 %s99, 1
          %s576 = scalar_lea.sflag [#allocation3], %s575
          %s577 = sand.u32 %s99, 1
          %s578 = scalar_lea.vmem [#allocation2], %s577
          %579 = dma.done %s576, 16
        $region44: #{tpu_custom_call.1} parent=39 // pred_fallthru
          _
      $region40: #{tpu_custom_call.1} parent=5 // pred_fallthru
        _
    $region6: #{tpu_custom_call.1} parent=1 // loop_footer
      %s16 = sadd.s32 1, %s12
    $region7: #{tpu_custom_call.1} parent=1 // loop_footer_branch
      %11 = sbr.rel target = $region3
    $region8: #{tpu_custom_call.1} parent=1 // loop_exit
      _
    %580 = vsyncpa [#allocation3], 1
    %s581 = scalar_lea.sflag [#allocation3], 1
    %582 = vsyncpa %s581, 1

</llo_original>
